<compile_context>
chip_gen: v7x
topology: tpu7x:2x2x1
jax: 0.10.0
libtpu: 0.0.40
codegen_flags: <defaults>
</compile_context>

<pallas_src>
import functools

import jax
import jax.numpy as jnp
from jax.experimental import pallas as pl
from jax.experimental.pallas import tpu as pltpu

_MASK_VAL = -1e30   # additive mask for non-edges
_M_INIT = -5e29     # online-softmax running-max init; >> _MASK_VAL so a fully
                    # masked column block gives exp(_MASK_VAL - m) == 0 exactly


# ----------------------------------------------------------------------------
# helpers
# ----------------------------------------------------------------------------
def _round_up(x, m):
    return ((x + m - 1) // m) * m


def _pad128(c):
    return _round_up(max(int(c), 1), 128)


def _physical_vmem_bytes():
    try:
        return int(pltpu.get_tpu_info().vmem_capacity_bytes)
    except Exception:
        return 64 << 20          # conservative fallback: v7x per-TensorCore VMEM


def _vmem_limit(resident_bytes, temp_bytes=0):
    """Scoped-VMEM limit sized to the tiles, clamped to ~80% of physical VMEM
    (~51 MiB on v7x, ~102 MiB on v5e/v6e) to leave compiler headroom."""
    cap = int(_physical_vmem_bytes() * 0.8)
    est = int(resident_bytes) + int(temp_bytes) + (4 << 20)
    return int(min(max(est, 8 << 20), cap))


def _pick_tiles(n_pad):
    """Row/column tiles: multiples of 128 dividing n_pad.  tm capped at 256
    (bounds the per-step working set for v7x); tk capped at 512 (amortizes
    per-step overhead while bounding the (tm, tk) f32 temporaries)."""
    tm = 256 if (n_pad % 256 == 0 and n_pad >= 512) else 128
    tk = 128
    for cand in (512, 384, 256, 128):
        if cand <= n_pad and n_pad % cand == 0:
            tk = cand
            break
    return tm, tk


# ----------------------------------------------------------------------------
# Kernel 1: fused projection  xa = x @ [W | W@att_src | W@att_dst]
# ----------------------------------------------------------------------------
def _gat_project_kernel(x_ref, w_ref, xp_ref, asrc_ref, adst_ref, *, hc, heads):
    xa = jnp.dot(x_ref[...], w_ref[...],
                 preferred_element_type=jnp.float32)      # (TM, hc + 2*heads)
    xp_ref[...] = xa[:, :hc].astype(xp_ref.dtype)          # bf16 value features
    asrc_ref[...] = xa[:, hc:hc + heads]                    # f32 per-node src scores
    adst_ref[...] = xa[:, hc + heads:hc + 2 * heads]        # f32 per-node dst scores


# ----------------------------------------------------------------------------
# Kernel 2: masked online-softmax attention + aggregation
#   grid = (row tiles, column tiles); column axis is the reduction ("arbitrary")
# ----------------------------------------------------------------------------
def _gat_attend_kernel(adj_ref, adst_ref, asrc_ref, xp_ref, b_ref, o_ref,
                       m_sc, acc_sc, *, heads, out_ch, apply_relu,
                       apply_log_softmax):
    k = pl.program_id(1)

    @pl.when(k == 0)
    def _():
        m_sc[...] = jnp.full_like(m_sc, _M_INIT)
        acc_sc[...] = jnp.zeros_like(acc_sc)

    mask = adj_ref[...] != 0                 # (TM, TK) bool from int8 adjacency
    a_dst = adst_ref[...]                    # (TM, heads) f32
    a_src = asrc_ref[...]                    # (heads, TK) f32 (pre-transposed)

    for h in range(heads):                   # static, small
        e = a_dst[:, h:h + 1] + a_src[h:h + 1, :]           # (TM, TK)
        e = jnp.where(e > 0.0, e, 0.2 * e)                    # LeakyReLU(0.2)
        e = jnp.where(mask, e, _MASK_VAL)
        m_prev = m_sc[h]                                      # (TM, 1)
        m_new = jnp.maximum(m_prev, jnp.max(e, axis=-1, keepdims=True))
        p = jnp.exp(e - m_new)                                # masked -> exactly 0
        # ones column folded into xp_ref: last output column IS the softmax
        # denominator (no XLU cross-lane sum; MXU has plenty of slack).
        contrib = jnp.dot(p.astype(jnp.bfloat16), xp_ref[h],
                          preferred_element_type=jnp.float32)  # (TM, out_ch+1)
        acc_sc[h] = jnp.exp(m_prev - m_new) * acc_sc[h] + contrib
        m_sc[h] = m_new

    @pl.when(k == pl.num_programs(1) - 1)
    def _():
        cols = []
        for h in range(heads):
            acc = acc_sc[h]                                   # (TM, out_ch+1)
            denom = jnp.maximum(acc[:, out_ch:out_ch + 1], 1e-20)
            res = acc[:, :out_ch] * pl.reciprocal(denom, approx=True)
            res = res + b_ref[:, h * out_ch:(h + 1) * out_ch]
            if apply_relu:
                res = jnp.maximum(res, 0.0)
            if apply_log_softmax:
                cols.append(res)
            else:
                # direct per-head store — no materialized (TM, hc) concat copy
                o_ref[:, h * out_ch:(h + 1) * out_ch] = res.astype(o_ref.dtype)
        if apply_log_softmax:
            out = cols[0] if heads == 1 else jnp.concatenate(cols, axis=1)
            mx = jnp.max(out, axis=1, keepdims=True)
            s = out - mx
            out = s - jnp.log(jnp.sum(jnp.exp(s), axis=1, keepdims=True))
            o_ref[...] = out.astype(o_ref.dtype)


# ----------------------------------------------------------------------------
# Per-layer wrapper: 2 pallas_calls
# ----------------------------------------------------------------------------
def gat_conv_layer(x, layer, adj, *, tm, tk, apply_relu, apply_log_softmax,
                   out_dtype):
    n_pad, fin = x.shape
    heads, out_ch = layer["heads"], layer["out_ch"]
    hc = heads * out_ch
    oc_aug = out_ch + 1
    wcols = hc + 2 * heads

    # --- 1) fused projection (+ folded attention scores), row-tiled ----------
    proj_resident = 2 * (tm * _pad128(fin) * 2 + fin * _pad128(wcols) * 2
                         + tm * _pad128(hc) * 2 + 2 * tm * 128 * 4)
    proj_temps = 2 * tm * _pad128(wcols) * 4
    xp, a_src, a_dst = pl.pallas_call(
        functools.partial(_gat_project_kernel, hc=hc, heads=heads),
        grid=(n_pad // tm,),
        in_specs=[pl.BlockSpec((tm, fin), lambda i: (i, 0)),
                  pl.BlockSpec((fin, wcols), lambda i: (0, 0))],
        out_specs=[pl.BlockSpec((tm, hc), lambda i: (i, 0)),
                   pl.BlockSpec((tm, heads), lambda i: (i, 0)),
                   pl.BlockSpec((tm, heads), lambda i: (i, 0))],
        out_shape=[jax.ShapeDtypeStruct((n_pad, hc), jnp.bfloat16),
                   jax.ShapeDtypeStruct((n_pad, heads), jnp.float32),
                   jax.ShapeDtypeStruct((n_pad, heads), jnp.float32)],
        compiler_params=pltpu.CompilerParams(
            dimension_semantics=("parallel",),
            vmem_limit_bytes=_vmem_limit(proj_resident, proj_temps)),
    )(x, layer["w_all"])

    # One-time XLA relayouts (O(N*hc), negligible vs the O(N^2) adj stream):
    #  * a_src transposed once (hoisted out of the attention kernel),
    #  * per-head value slabs with an appended ones column so the softmax
    #    denominator falls out of the same MXU pass as the aggregation.
    a_src_t = a_src.T                                               # (heads, N)
    xp3 = xp.reshape(n_pad, heads, out_ch).transpose(1, 0, 2)        # (heads, N, oc)
    xp_aug = jnp.concatenate(
        [xp3, jnp.ones((heads, n_pad, 1), jnp.bfloat16)], axis=-1)   # (heads, N, oc+1)

    # --- 2) attention + aggregation: row tiles x column tiles ----------------
    attn_resident = (2 * (tm * tk                              # adj tile (int8)
                          + tm * 128 * 4                       # a_dst tile
                          + 8 * tk * 4                         # a_src_t tile
                          + heads * tk * _pad128(oc_aug) * 2   # xp_aug tile
                          + _pad128(hc) * 4                    # bias
                          + tm * _pad128(hc) * 4)              # out tile
                     + heads * tm * 128 * 4                    # running-max scratch
                     + heads * tm * _pad128(oc_aug) * 4)       # acc scratch
    attn_temps = (4 + heads) * tm * tk * 4
    out = pl.pallas_call(
        functools.partial(_gat_attend_kernel, heads=heads, out_ch=out_ch,
                          apply_relu=apply_relu,
                          apply_log_softmax=apply_log_softmax),
        grid=(n_pad // tm, n_pad // tk),
        in_specs=[pl.BlockSpec((tm, tk), lambda i, k: (i, k)),          # adj (streamed)
                  pl.BlockSpec((tm, heads), lambda i, k: (i, 0)),       # a_dst (row tile)
                  pl.BlockSpec((heads, tk), lambda i, k: (0, k)),       # a_src (col tile)
                  pl.BlockSpec((heads, tk, oc_aug), lambda i, k: (0, k, 0)),  # values+1s
                  pl.BlockSpec((1, hc), lambda i, k: (0, 0))],          # bias
        out_specs=pl.BlockSpec((tm, hc), lambda i, k: (i, 0)),
        out_shape=jax.ShapeDtypeStruct((n_pad, hc), out_dtype),
        scratch_shapes=[pltpu.VMEM((heads, tm, 1), jnp.float32),        # running max
                        pltpu.VMEM((heads, tm, oc_aug), jnp.float32)],  # acc (+denom)
        compiler_params=pltpu.CompilerParams(
            dimension_semantics=("parallel", "arbitrary"),
            vmem_limit_bytes=_vmem_limit(attn_resident, attn_temps)),
    )(adj, a_dst, a_src_t, xp_aug, layer["bias"])
    return out


# ----------------------------------------------------------------------------
# Params / forward
# ----------------------------------------------------------------------------
def init_gat_params(key, in_channels, hidden_channels, out_channels, heads):
    """Deterministic glorot-ish init; attention vectors folded into the weight
    so a_src / a_dst come out of the same MXU pass as the projected features."""
    dims = [
        (in_channels, hidden_channels, heads),
        (hidden_channels * heads, hidden_channels, heads),
        (hidden_channels * heads, out_channels, 1),
    ]
    params = []
    for (fin, fout, h) in dims:
        key, k1, k2, k3 = jax.random.split(key, 4)
        scale = (2.0 / (fin + h * fout)) ** 0.5
        w = jax.random.normal(k1, (fin, h * fout), jnp.float32) * scale
        att_src = jax.random.normal(k2, (h, fout), jnp.float32) * scale
        att_dst = jax.random.normal(k3, (h, fout), jnp.float32) * scale
        w3 = w.reshape(fin, h, fout)
        wa_src = jnp.einsum("fhc,hc->fh", w3, att_src)    # wa_src[:, h] = W_h @ att_src_h
        wa_dst = jnp.einsum("fhc,hc->fh", w3, att_dst)
        w_all = jnp.concatenate([w, wa_src, wa_dst], axis=1).astype(jnp.bfloat16)
        params.append(dict(
            w_all=w_all,
            bias=jnp.zeros((1, h * fout), jnp.float32),
            heads=h, out_ch=fout,
        ))
    return params


def gat_forward(x, edge_index, params):
    n, _ = x.shape
    n_pad = max(128, _round_up(n, 128))      # pad N to the tile grid; padded
    tm, tk = _pick_tiles(n_pad)              # rows/cols are masked / sliced off

    src, dst = edge_index[0], edge_index[1]
    # Dense int8 adjacency: adj[i, j] != 0 iff edge j -> i; add self-loops.
    adj = jnp.zeros((n_pad, n_pad), jnp.int32).at[dst, src].set(1)
    adj = jnp.maximum(adj, jnp.eye(n_pad, dtype=jnp.int32)).astype(jnp.int8)

    h = jnp.pad(x, ((0, n_pad - n), (0, 0))).astype(jnp.bfloat16)

    # Layer 1 + ReLU (dropout = identity at inference)
    h = gat_conv_layer(h, params[0], adj, tm=tm, tk=tk,
                       apply_relu=True, apply_log_softmax=False,
                       out_dtype=jnp.bfloat16)
    # Layer 2 + ReLU
    h = gat_conv_layer(h, params[1], adj, tm=tm, tk=tk,
                       apply_relu=True, apply_log_softmax=False,
                       out_dtype=jnp.bfloat16)
    # Layer 3 + log_softmax over feature dim (dim=1)
    out = gat_conv_layer(h, params[2], adj, tm=tm, tk=tk,
                         apply_relu=False, apply_log_softmax=True,
                         out_dtype=jnp.float32)
    return out[:n]


# ----------------------------------------------------------------------------
# Pure-JAX reference (mirrors the bf16 storage used by the kernel path)
# ----------------------------------------------------------------------------
def gat_reference(x, edge_index, params):
    n = x.shape[0]
    src, dst = edge_index[0], edge_index[1]
    mask = jnp.zeros((n, n), dtype=bool).at[dst, src].set(True)
    mask = mask | jnp.eye(n, dtype=bool)
    h = x
    for li, layer in enumerate(params):
        heads, oc = layer["heads"], layer["out_ch"]
        hc = heads * oc
        w = layer["w_all"].astype(jnp.float32)
        h_in = h.astype(jnp.bfloat16).astype(jnp.float32)
        xa = h_in @ w
        xp = xa[:, :hc].astype(jnp.bfloat16).astype(jnp.float32)
        a_src = xa[:, hc:hc + heads]
        a_dst = xa[:, hc + heads:hc + 2 * heads]
        outs = []
        for hd in range(heads):
            e = a_dst[:, hd:hd + 1] + a_src[:, hd][None, :]
            e = jnp.where(e > 0.0, e, 0.2 * e)
            e = jnp.where(mask, e, -jnp.inf)
            alpha = jax.nn.softmax(e, axis=-1)
            outs.append(alpha @ xp[:, hd * oc:(hd + 1) * oc])
        o = jnp.concatenate(outs, axis=1) + layer["bias"]
        if li < len(params) - 1:
            o = jnp.maximum(o, 0.0)
        h = o
    return jax.nn.log_softmax(h, axis=1)


if __name__ == "__main__":
    key = jax.random.PRNGKey(0)
    k_x, k_e, k_p = jax.random.split(key, 3)

    N = 700              # nodes (pads to 768 -> exercises padding + both grid axes)
    IN_CH = 16
    HIDDEN = 16
    OUT_CH = 8
    HEADS = 4
    E = 2800             # edges

    x = jax.random.normal(k_x, (N, IN_CH), jnp.float32)
    edge_index = jax.random.randint(k_e, (2, E), 0, N, dtype=jnp.int32)
    params = init_gat_params(k_p, IN_CH, HIDDEN, OUT_CH, HEADS)

    out = gat_forward(x, edge_index, params)
    out = jax.block_until_ready(out)

    assert out.shape == (N, OUT_CH), out.shape
    # rows of log_softmax should exp-sum to 1
    row_sums = jnp.sum(jnp.exp(out), axis=1)
    assert bool(jnp.all(jnp.abs(row_sums - 1.0) < 1e-3))

    # numerical check against a pure-JAX f32 reference (bf16 storage mirrored)
    ref = gat_reference(x, edge_index, params)
    err = float(jnp.max(jnp.abs(out - ref)))
    assert err < 0.15, f"max abs diff vs reference: {err}"

    print("KERNEL_OK")
</pallas_src>

<mosaic_0001>
module attributes {stable_mosaic.version = 11 : i64} {
  func.func @_gat_project_kernel(%arg0: i32, %arg1: memref<256x16xbf16, #tpu.memory_space<vmem>>, %arg2: memref<16x72xbf16, #tpu.memory_space<vmem>>, %arg3: memref<256x64xbf16, #tpu.memory_space<vmem>>, %arg4: memref<256x4xf32, #tpu.memory_space<vmem>>, %arg5: memref<256x4xf32, #tpu.memory_space<vmem>>) attributes {dimension_semantics = [#tpu.dimension_semantics<parallel>], iteration_bounds = array<i64: 3>, scalar_prefetch = 0 : i64, scratch_operands = 0 : i64, tpu.core_type = #tpu.core_type<tc>, window_params = [{transform_indices = @transform_0, window_bounds = array<i64: 256, 16>}, {pipeline_mode = #tpu.pipeline_mode<synchronous>, transform_indices = @transform_1, window_bounds = array<i64: 16, 72>}, {transform_indices = @transform_2, window_bounds = array<i64: 256, 64>}, {transform_indices = @transform_3, window_bounds = array<i64: 256, 4>}, {transform_indices = @transform_4, window_bounds = array<i64: 256, 4>}]} {
    %c0 = arith.constant 0 : index
    %c0_0 = arith.constant 0 : index
    %0 = vector.load %arg1[%c0, %c0_0] : memref<256x16xbf16, #tpu.memory_space<vmem>>, vector<256x16xbf16>
    %c0_1 = arith.constant 0 : index
    %c0_2 = arith.constant 0 : index
    %1 = vector.load %arg2[%c0_1, %c0_2] : memref<16x72xbf16, #tpu.memory_space<vmem>>, vector<16x72xbf16>
    %cst = arith.constant dense<0.000000e+00> : vector<256x72xf32>
    %2 = tpu.matmul %0, %1, %cst {dimension_numbers = #tpu.dot_dimension_numbers<[1], [0], [0], [1], [0, 0, 1, 1], [], []>} : vector<256x16xbf16>, vector<16x72xbf16>, vector<256x72xf32> -> vector<256x72xf32>
    %3 = vector.extract_strided_slice %2 {offsets = [0, 0], sizes = [256, 64], strides = [1, 1]} : vector<256x72xf32> to vector<256x64xf32>
    %4 = arith.truncf %3 : vector<256x64xf32> to vector<256x64xbf16>
    %c0_3 = arith.constant 0 : index
    %c0_4 = arith.constant 0 : index
    %5 = vector.load %arg3[%c0_3, %c0_4] : memref<256x64xbf16, #tpu.memory_space<vmem>>, vector<256x64xbf16>
    tpu.vector_store %arg3[%c0_3, %c0_4], %4 {strides = array<i32>} : memref<256x64xbf16, #tpu.memory_space<vmem>>, vector<256x64xbf16>,
    %6 = vector.extract_strided_slice %2 {offsets = [0, 64], sizes = [256, 4], strides = [1, 1]} : vector<256x72xf32> to vector<256x4xf32>
    %c0_5 = arith.constant 0 : index
    %c0_6 = arith.constant 0 : index
    %7 = vector.load %arg4[%c0_5, %c0_6] : memref<256x4xf32, #tpu.memory_space<vmem>>, vector<256x4xf32>
    tpu.vector_store %arg4[%c0_5, %c0_6], %6 {strides = array<i32>} : memref<256x4xf32, #tpu.memory_space<vmem>>, vector<256x4xf32>,
    %8 = vector.extract_strided_slice %2 {offsets = [0, 68], sizes = [256, 4], strides = [1, 1]} : vector<256x72xf32> to vector<256x4xf32>
    %c0_7 = arith.constant 0 : index
    %c0_8 = arith.constant 0 : index
    %9 = vector.load %arg5[%c0_7, %c0_8] : memref<256x4xf32, #tpu.memory_space<vmem>>, vector<256x4xf32>
    tpu.vector_store %arg5[%c0_7, %c0_8], %8 {strides = array<i32>} : memref<256x4xf32, #tpu.memory_space<vmem>>, vector<256x4xf32>,
    return
  }
  func.func @transform_0(%arg0: i32) -> (i32, i32) {
    %c0_i32 = arith.constant 0 : i32
    %c0_i32_0 = arith.constant 0 : i32
    return %arg0, %c0_i32 : i32, i32
  }
  func.func @transform_1(%arg0: i32) -> (i32, i32) {
    %c0_i32 = arith.constant 0 : i32
    %c0_i32_0 = arith.constant 0 : i32
    %c0_i32_1 = arith.constant 0 : i32
    return %c0_i32, %c0_i32_0 : i32, i32
  }
  func.func @transform_2(%arg0: i32) -> (i32, i32) {
    %c0_i32 = arith.constant 0 : i32
    %c0_i32_0 = arith.constant 0 : i32
    return %arg0, %c0_i32 : i32, i32
  }
  func.func @transform_3(%arg0: i32) -> (i32, i32) {
    %c0_i32 = arith.constant 0 : i32
    %c0_i32_0 = arith.constant 0 : i32
    return %arg0, %c0_i32 : i32, i32
  }
  func.func @transform_4(%arg0: i32) -> (i32, i32) {
    %c0_i32 = arith.constant 0 : i32
    %c0_i32_0 = arith.constant 0 : i32
    return %arg0, %c0_i32 : i32, i32
  }
}

</mosaic_0001>

<llo_original>
// kernel: tpu_custom_call.1
$region0: #{tpu_custom_call.1}
  #allocation0 [shape = 'u32[]', space=smem, size = 0x4, offset = 0x4, fixed_abs, tag = 'smem constant byte address 0x4 - core index']
  #allocation1 [shape = 'u32[144,128]{1,0:T(1,128)}', space=vmem, size = 0x12000, scoped, tag = 'internal scratch']
  %s0 = inlined_call_operand.vmem [shape: bf16[768,16], index: 0, kind: input, shape index: {}]
  %s1 = inlined_call_operand.vmem [shape: bf16[16,72], index: 1, kind: input, shape index: {}]
  %s2 = inlined_call_operand.vmem [shape: bf16[768,64], index: 2, kind: output, shape index: {0}]
  %s3 = inlined_call_operand.vmem [shape: f32[768,4], index: 3, kind: output, shape index: {1}]
  %s4 = inlined_call_operand.vmem [shape: f32[768,4], index: 4, kind: output, shape index: {2}]
  %5 = xla_tuple %s2, %s3, %s4
  %s6 = sld [smem:[#allocation0]]
  $region57: #{tpu_custom_call.1} parent=0
    _
  %s8 = ssub.s32 1, %s6
  %s9 = scalar_select 0, %s8, %s6
  loop: start=0, step=1, limit=5
  $region2: #{tpu_custom_call.1} parent=0 // loop_pre_header
    _
  $region3: #{tpu_custom_call.1} parent=0 // loop_header
    %s11 = sphi 0, %s15
    %p12 = scmp.ge.s32.totalorder %s11, 5
    %s21 = sphi 0, %s23
    %s24 = sphi 0, %s21
    %s25 = sphi 0, %s24
    %s41 = sphi 0, %s25
    %s45 = sphi 0, %s45
    %s47 = sphi 0, %s45
    %s48 = sphi 0, %s47
    %s62 = sphi 0, %s48
    %s68 = sphi 0, %s70
    %s71 = sphi 0, %s68
    %s72 = sphi 0, %s71
    %s88 = sphi 0, %s72
    %s94 = sphi 0, %s96
    %s97 = sphi 0, %s94
    %s98 = sphi 0, %s97
    %s114 = sphi 0, %s98
    %s120 = sphi 0, %s122
    %s123 = sphi 0, %s120
    %s124 = sphi 0, %s123
    %s140 = sphi 0, %s124
  $region4: #{tpu_custom_call.1} parent=0 // loop_header_branch
    %14 = sbr.rel (%p12) target = $region8
  $region5: #{tpu_custom_call.1} parent=0 // loop_body
    %s16 = ssub.s32 %s11, 1
    %s17 = ssub.s32 %s11, 2
    %s18 = sadd.s32 %s11, 1
    %s19 = ssub.s32 %s11, %s18
    %p20 = scmp.eq.s32.totalorder %s19, 0
    %s22 = sadd.s32 %s21, 1
    %s23 = scalar_select %p20, %s21, %s22
    %p26 = pneg %p20
    %p27 = scmp.eq.s32.totalorder %s11, 2
    %p28 = por %p26, %p27
    %p29 = scmp.ne.s32.totalorder %s21, %s24
    %p30 = scmp.eq.s32.totalorder %s11, 0
    %p31 = por %p29, %p30
    %p32 = scmp.ne.s32.totalorder %s21, %s24
    %p33 = scmp.eq.s32.totalorder %s16, 2
    %p34 = por %p32, %p33
    %p35 = scmp.ne.s32.totalorder %s24, %s25
    %p36 = scmp.eq.s32.totalorder %s16, 0
    %p37 = por %p35, %p36
    %p38 = scmp.ne.s32.totalorder %s24, %s25
    %p39 = scmp.eq.s32.totalorder %s17, 2
    %p40 = por %p38, %p39
    %p42 = scmp.ne.s32.totalorder %s25, %s41
    %p43 = scmp.eq.s32.totalorder %s17, 0
    %p44 = por %p42, %p43
    %s46 = sadd.s32 %s45, 1
    %p49 = scmp.eq.s32.totalorder %s11, 2
    %p50 = scmp.ne.s32.totalorder %s45, %s47
    %p51 = scmp.eq.s32.totalorder %s11, 0
    %p52 = por %p50, %p51
    %p53 = scmp.ne.s32.totalorder %s45, %s47
    %p54 = scmp.eq.s32.totalorder %s16, 2
    %p55 = por %p53, %p54
    %p56 = scmp.ne.s32.totalorder %s47, %s48
    %p57 = scmp.eq.s32.totalorder %s16, 0
    %p58 = por %p56, %p57
    %p59 = scmp.ne.s32.totalorder %s47, %s48
    %p60 = scmp.eq.s32.totalorder %s17, 2
    %p61 = por %p59, %p60
    %p63 = scmp.ne.s32.totalorder %s48, %s62
    %p64 = scmp.eq.s32.totalorder %s17, 0
    %p65 = por %p63, %p64
    %s66 = ssub.s32 %s11, %s18
    %p67 = scmp.eq.s32.totalorder %s66, 0
    %s69 = sadd.s32 %s68, 1
    %s70 = scalar_select %p67, %s68, %s69
    %p73 = pneg %p67
    %p74 = scmp.eq.s32.totalorder %s11, 2
    %p75 = por %p73, %p74
    %p76 = scmp.ne.s32.totalorder %s68, %s71
    %p77 = scmp.eq.s32.totalorder %s11, 0
    %p78 = por %p76, %p77
    %p79 = scmp.ne.s32.totalorder %s68, %s71
    %p80 = scmp.eq.s32.totalorder %s16, 2
    %p81 = por %p79, %p80
    %p82 = scmp.ne.s32.totalorder %s71, %s72
    %p83 = scmp.eq.s32.totalorder %s16, 0
    %p84 = por %p82, %p83
    %p85 = scmp.ne.s32.totalorder %s71, %s72
    %p86 = scmp.eq.s32.totalorder %s17, 2
    %p87 = por %p85, %p86
    %p89 = scmp.ne.s32.totalorder %s72, %s88
    %p90 = scmp.eq.s32.totalorder %s17, 0
    %p91 = por %p89, %p90
    %s92 = ssub.s32 %s11, %s18
    %p93 = scmp.eq.s32.totalorder %s92, 0
    %s95 = sadd.s32 %s94, 1
    %s96 = scalar_select %p93, %s94, %s95
    %p99 = pneg %p93
    %p100 = scmp.eq.s32.totalorder %s11, 2
    %p101 = por %p99, %p100
    %p102 = scmp.ne.s32.totalorder %s94, %s97
    %p103 = scmp.eq.s32.totalorder %s11, 0
    %p104 = por %p102, %p103
    %p105 = scmp.ne.s32.totalorder %s94, %s97
    %p106 = scmp.eq.s32.totalorder %s16, 2
    %p107 = por %p105, %p106
    %p108 = scmp.ne.s32.totalorder %s97, %s98
    %p109 = scmp.eq.s32.totalorder %s16, 0
    %p110 = por %p108, %p109
    %p111 = scmp.ne.s32.totalorder %s97, %s98
    %p112 = scmp.eq.s32.totalorder %s17, 2
    %p113 = por %p111, %p112
    %p115 = scmp.ne.s32.totalorder %s98, %s114
    %p116 = scmp.eq.s32.totalorder %s17, 0
    %p117 = por %p115, %p116
    %s118 = ssub.s32 %s11, %s18
    %p119 = scmp.eq.s32.totalorder %s118, 0
    %s121 = sadd.s32 %s120, 1
    %s122 = scalar_select %p119, %s120, %s121
    %p125 = pneg %p119
    %p126 = scmp.eq.s32.totalorder %s11, 2
    %p127 = por %p125, %p126
    %p128 = scmp.ne.s32.totalorder %s120, %s123
    %p129 = scmp.eq.s32.totalorder %s11, 0
    %p130 = por %p128, %p129
    %p131 = scmp.ne.s32.totalorder %s120, %s123
    %p132 = scmp.eq.s32.totalorder %s16, 2
    %p133 = por %p131, %p132
    %p134 = scmp.ne.s32.totalorder %s123, %s124
    %p135 = scmp.eq.s32.totalorder %s16, 0
    %p136 = por %p134, %p135
    %p137 = scmp.ne.s32.totalorder %s123, %s124
    %p138 = scmp.eq.s32.totalorder %s17, 2
    %p139 = por %p137, %p138
    %p141 = scmp.ne.s32.totalorder %s124, %s140
    %p142 = scmp.eq.s32.totalorder %s17, 0
    %p143 = por %p141, %p142
    %p144 = scmp.le.s32.totalorder 1, %s11
    %p145 = scmp.lt.s32.totalorder %s11, 4
    %p146 = pnand %p144, %p145
    %p147 = pneg %p146
    // Predicated region
    $region9: #{tpu_custom_call.1} parent=5 // pred_check
      _
    $region10: #{tpu_custom_call.1} parent=5 // pred_check_branch
      %149 = sbr.rel (%p146) target = $region12
    $region11: #{tpu_custom_call.1} parent=5 // pred_region
      %s150 = ssub.s32 %s11, 1
      // Predicated region
      $region13: #{tpu_custom_call.1} parent=11 // pred_check
        %p151 = pneg %p58
      $region14: #{tpu_custom_call.1} parent=11 // pred_check_branch
        %153 = sbr.rel (%p151) target = $region16
      $region15: #{tpu_custom_call.1} parent=11 // pred_region
        _
      $region16: #{tpu_custom_call.1} parent=11 // pred_fallthru
        _
    $region12: #{tpu_custom_call.1} parent=5 // pred_fallthru
      _
    %p154 = scmp.lt.s32.totalorder %s11, 3
    // Predicated region
    $region17: #{tpu_custom_call.1} parent=5 // pred_check
      %p155 = pneg %p154
    $region18: #{tpu_custom_call.1} parent=5 // pred_check_branch
      %157 = sbr.rel (%p155) target = $region20
    $region19: #{tpu_custom_call.1} parent=5 // pred_region
      // Predicated region
      $region21: #{tpu_custom_call.1} parent=19 // pred_check
        %p158 = pneg %p31
      $region22: #{tpu_custom_call.1} parent=19 // pred_check_branch
        %160 = sbr.rel (%p158) target = $region24
      $region23: #{tpu_custom_call.1} parent=19 // pred_region
        %s161 = smul.u32 32, %s11
        %p162 = scmp.lt.s32.totalorder %s161, 95
        %s163 = scalar_select %p162, %s161, 95
        %s164 = smul.addr %s163, 4
        %s165 = scalar_lea.vmem %s0, %s164
        %s166 = smul.u32 32, %s11
      $region24: #{tpu_custom_call.1} parent=19 // pred_fallthru
        _
    $region20: #{tpu_custom_call.1} parent=5 // pred_fallthru
      _
    %p167 = scmp.le.s32.totalorder 1, %s11
    %p168 = scmp.lt.s32.totalorder %s11, 4
    %p169 = pnand %p167, %p168
    %p170 = pneg %p169
    // Predicated region
    $region25: #{tpu_custom_call.1} parent=5 // pred_check
      _
    $region26: #{tpu_custom_call.1} parent=5 // pred_check_branch
      %172 = sbr.rel (%p169) target = $region28
    $region27: #{tpu_custom_call.1} parent=5 // pred_region
      %s173 = ssub.s32 %s11, 1
      %s174 = smul.u32 32, %s16
      %p175 = scmp.lt.s32.totalorder %s174, 95
      %s176 = scalar_select %p175, %s174, 95
      %s177 = smul.addr %s176, 4
      %s178 = scalar_lea.vmem %s0, %s177
      %p179 = pneg %p37
      %p180 = pneg %p34
      %p181 = pneg %p58
      %p182 = pneg %p55
      %p183 = pneg %p84
      %p184 = pneg %p81
      %s185 = smul.u32 32, %s16
      %p186 = scmp.lt.s32.totalorder %s185, 95
      %s187 = scalar_select %p186, %s185, 95
      %s188 = smul.addr %s187, 4
      %s189 = scalar_lea.vmem %s2, %s188
      %p190 = pneg %p110
      %p191 = pneg %p107
      %s192 = smul.u32 32, %s16
      %p193 = scmp.lt.s32.totalorder %s192, 95
      %s194 = scalar_select %p193, %s192, 95
      %s195 = smul.addr %s194, 8
      %s196 = scalar_lea.vmem %s3, %s195
      %p197 = pneg %p136
      %p198 = pneg %p133
      %s199 = smul.u32 32, %s16
      %p200 = scmp.lt.s32.totalorder %s199, 95
      %s201 = scalar_select %p200, %s199, 95
      %s202 = smul.addr %s201, 8
      %s203 = scalar_lea.vmem %s4, %s202
      %s204 = smul.u32 32, %s16
      %p205 = scmp.lt.s32.totalorder %s204, 95
      %s206 = scalar_select %p205, %s204, 95
      %s207 = smul.addr %s206, 4
      %s208 = scalar_lea.vmem %s0, %s207
      %s209 = smul.u32 32, %s16
      %s210 = smul.u32 32, %s16
      %p211 = scmp.lt.s32.totalorder %s210, 95
      %s212 = scalar_select %p211, %s210, 95
      %s213 = smul.addr %s212, 4
      %s214 = scalar_lea.vmem %s2, %s213
      %s215 = smul.u32 32, %s16
      %s216 = smul.u32 32, %s16
      %p217 = scmp.lt.s32.totalorder %s216, 95
      %s218 = scalar_select %p217, %s216, 95
      %s219 = smul.addr %s218, 8
      %s220 = scalar_lea.vmem %s3, %s219
      %s221 = smul.u32 32, %s16
      %s222 = smul.u32 32, %s16
      %p223 = scmp.lt.s32.totalorder %s222, 95
      %s224 = scalar_select %p223, %s222, 95
      %s225 = smul.addr %s224, 8
      %s226 = scalar_lea.vmem %s4, %s225
      %s227 = smul.u32 32, %s16
      %v229 = vld [vmem:[%s208] sm:$0xf]
      %v230 = vld [vmem:[%s208 + $0x4] sm:$0xf]
      %v231 = vld [vmem:[%s208 + $0x8] sm:$0xf]
      %v232 = vld [vmem:[%s208 + $0xc] sm:$0xf]
      %v233 = vld [vmem:[%s208 + $0x10] sm:$0xf]
      %v234 = vld [vmem:[%s208 + $0x14] sm:$0xf]
      %v235 = vld [vmem:[%s208 + $0x18] sm:$0xf]
      %v236 = vld [vmem:[%s208 + $0x1c] sm:$0xf]
      %v237 = vld [vmem:[%s208 + $0x20] sm:$0xf]
      %v238 = vld [vmem:[%s208 + $0x24] sm:$0xf]
      %v239 = vld [vmem:[%s208 + $0x28] sm:$0xf]
      %v240 = vld [vmem:[%s208 + $0x2c] sm:$0xf]
      %v241 = vld [vmem:[%s208 + $0x30] sm:$0xf]
      %v242 = vld [vmem:[%s208 + $0x34] sm:$0xf]
      %v243 = vld [vmem:[%s208 + $0x38] sm:$0xf]
      %v244 = vld [vmem:[%s208 + $0x3c] sm:$0xf]
      %v245 = vld [vmem:[%s208 + $0x40] sm:$0xf]
      %v246 = vld [vmem:[%s208 + $0x44] sm:$0xf]
      %v247 = vld [vmem:[%s208 + $0x48] sm:$0xf]
      %v248 = vld [vmem:[%s208 + $0x4c] sm:$0xf]
      %v249 = vld [vmem:[%s208 + $0x50] sm:$0xf]
      %v250 = vld [vmem:[%s208 + $0x54] sm:$0xf]
      %v251 = vld [vmem:[%s208 + $0x58] sm:$0xf]
      %v252 = vld [vmem:[%s208 + $0x5c] sm:$0xf]
      %v253 = vld [vmem:[%s208 + $0x60] sm:$0xf]
      %v254 = vld [vmem:[%s208 + $0x64] sm:$0xf]
      %v255 = vld [vmem:[%s208 + $0x68] sm:$0xf]
      %v256 = vld [vmem:[%s208 + $0x6c] sm:$0xf]
      %v257 = vld [vmem:[%s208 + $0x70] sm:$0xf]
      %v258 = vld [vmem:[%s208 + $0x74] sm:$0xf]
      %v259 = vld [vmem:[%s208 + $0x78] sm:$0xf]
      %v260 = vld [vmem:[%s208 + $0x7c] sm:$0xf]
      %v261 = vld [vmem:[%s1] sm:$0xf]
      %v262 = vld [vmem:[%s1 + $0x4] sm:$0xf]
      %v295 = vunpack.c.l.b16 %v229
      %v296 = vunpack.c.l.b16 %v230
      %v297 = vunpack.c.l.b16 %v231
      %v298 = vunpack.c.l.b16 %v232
      %v299 = vunpack.c.l.b16 %v233
      %v300 = vunpack.c.l.b16 %v234
      %v301 = vunpack.c.l.b16 %v235
      %v302 = vunpack.c.l.b16 %v236
      %v303 = vunpack.c.l.b16 %v237
      %v304 = vunpack.c.l.b16 %v238
      %v305 = vunpack.c.l.b16 %v239
      %v306 = vunpack.c.l.b16 %v240
      %v307 = vunpack.c.l.b16 %v241
      %v308 = vunpack.c.l.b16 %v242
      %v309 = vunpack.c.l.b16 %v243
      %v310 = vunpack.c.l.b16 %v244
      %v311 = vunpack.c.l.b16 %v245
      %v312 = vunpack.c.l.b16 %v246
      %v313 = vunpack.c.l.b16 %v247
      %v314 = vunpack.c.l.b16 %v248
      %v315 = vunpack.c.l.b16 %v249
      %v316 = vunpack.c.l.b16 %v250
      %v317 = vunpack.c.l.b16 %v251
      %v318 = vunpack.c.l.b16 %v252
      %v319 = vunpack.c.l.b16 %v253
      %v320 = vunpack.c.l.b16 %v254
      %v321 = vunpack.c.l.b16 %v255
      %v322 = vunpack.c.l.b16 %v256
      %v323 = vunpack.c.l.b16 %v257
      %v324 = vunpack.c.l.b16 %v258
      %v325 = vunpack.c.l.b16 %v259
      %v326 = vunpack.c.l.b16 %v260
      %v327 = vpack.c.b16 %v296, %v295
      %v328 = vpack.c.b16 %v298, %v297
      %v329 = vpack.c.b16 %v300, %v299
      %v330 = vpack.c.b16 %v302, %v301
      %v331 = vpack.c.b16 %v304, %v303
      %v332 = vpack.c.b16 %v306, %v305
      %v333 = vpack.c.b16 %v308, %v307
      %v334 = vpack.c.b16 %v310, %v309
      %v335 = vpack.c.b16 %v312, %v311
      %v336 = vpack.c.b16 %v314, %v313
      %v337 = vpack.c.b16 %v316, %v315
      %v338 = vpack.c.b16 %v318, %v317
      %v339 = vpack.c.b16 %v320, %v319
      %v340 = vpack.c.b16 %v322, %v321
      %v341 = vpack.c.b16 %v324, %v323
      %v342 = vpack.c.b16 %v326, %v325
      %v345 = vunpack.c.l.b16 %v261
      %v346 = vunpack.c.l.b16 %v262
      %v347 = vpack.c.b16 %v346, %v345
      %vm349 = vcmask 130048
      %v351 = vsel %vm349, %v327, 0
      %v354 = vsel %vm349, %v328, 0
      %v357 = vsel %vm349, %v329, 0
      %v360 = vsel %vm349, %v330, 0
      %v363 = vsel %vm349, %v331, 0
      %v366 = vsel %vm349, %v332, 0
      %v369 = vsel %vm349, %v333, 0
      %v372 = vsel %vm349, %v334, 0
      %v375 = vsel %vm349, %v335, 0
      %v378 = vsel %vm349, %v336, 0
      %v381 = vsel %vm349, %v337, 0
      %v384 = vsel %vm349, %v338, 0
      %v387 = vsel %vm349, %v339, 0
      %v390 = vsel %vm349, %v340, 0
      %v393 = vsel %vm349, %v341, 0
      %v396 = vsel %vm349, %v342, 0
      %398 = vmatprep.subr.bf16.mxu0 0
      %399 = vmatpush1.bf16.msra.mxu0 %v347
      %400 = vmatprep.subr.bf16.mxu0 0
      %401 = vmatpush1.bf16.msra.mxu0 0
      %402 = vmatprep.subr.bf16.mxu0 0
      %403 = vmatpush1.bf16.msra.mxu0 0
      %404 = vmatprep.subr.bf16.mxu0 0
      %405 = vmatpush1.bf16.msra.mxu0 0
      %406 = vmatprep.subr.bf16.mxu0 0
      %407 = vmatpush1.bf16.msra.mxu0 0
      %408 = vmatprep.subr.bf16.mxu0 0
      %409 = vmatpush1.bf16.msra.mxu0 0
      %410 = vmatprep.subr.bf16.mxu0 0
      %411 = vmatpush1.bf16.msra.mxu0 0
      %412 = vmatprep.subr.bf16.mxu0 0
      %413 = vmatpush1.bf16.msra.mxu0 0
      %414 = vmatprep.subr.bf16.mxu0 0
      %415 = vmatpush1.bf16.msra.mxu0 0
      %416 = vmatprep.subr.bf16.mxu0 0
      %417 = vmatpush1.bf16.msra.mxu0 0
      %418 = vmatprep.subr.bf16.mxu0 0
      %419 = vmatpush1.bf16.msra.mxu0 0
      %420 = vmatprep.subr.bf16.mxu0 0
      %421 = vmatpush1.bf16.msra.mxu0 0
      %422 = vmatprep.subr.bf16.mxu0 0
      %423 = vmatpush1.bf16.msra.mxu0 0
      %424 = vmatprep.subr.bf16.mxu0 0
      %425 = vmatpush1.bf16.msra.mxu0 0
      %426 = vmatprep.subr.bf16.mxu0 0
      %427 = vmatpush1.bf16.msra.mxu0 0
      %428 = vmatprep.subr.bf16.mxu0 0
      %429 = vmatpush1.bf16.msra.mxu0 0
      %430 = vmatprep.mubr.bf16.mxu0 0
      %431 = vmatmul.mubr.bf16.gmra.mrb[0].mxu0 %v351
      %v432 = vpop.f32.mrb[0].mxu0
      %v433 = vadd.f32 0.0, %v432
      %v434 = vpop.f32.mrb[0].mxu0
      %v435 = vpop.f32.mrb[0].mxu0
      %v436 = vadd.f32 0.0, %v435
      %v437 = vpop.f32.mrb[0].mxu0
      %438 = vmatprep.mubr.bf16.mxu0 0
      %439 = vmatmul.mubr.bf16.gmra.mrb[0].mxu0 %v354
      %v440 = vpop.f32.mrb[0].mxu0
      %v441 = vadd.f32 0.0, %v440
      %v442 = vpop.f32.mrb[0].mxu0
      %v443 = vpop.f32.mrb[0].mxu0
      %v444 = vadd.f32 0.0, %v443
      %v445 = vpop.f32.mrb[0].mxu0
      %446 = vmatprep.mubr.bf16.mxu0 0
      %447 = vmatmul.mubr.bf16.gmra.mrb[0].mxu0 %v357
      %v448 = vpop.f32.mrb[0].mxu0
      %v449 = vadd.f32 0.0, %v448
      %v450 = vpop.f32.mrb[0].mxu0
      %v451 = vpop.f32.mrb[0].mxu0
      %v452 = vadd.f32 0.0, %v451
      %v453 = vpop.f32.mrb[0].mxu0
      %454 = vmatprep.mubr.bf16.mxu0 0
      %455 = vmatmul.mubr.bf16.gmra.mrb[0].mxu0 %v360
      %v456 = vpop.f32.mrb[0].mxu0
      %v457 = vadd.f32 0.0, %v456
      %v458 = vpop.f32.mrb[0].mxu0
      %v459 = vpop.f32.mrb[0].mxu0
      %v460 = vadd.f32 0.0, %v459
      %v461 = vpop.f32.mrb[0].mxu0
      %462 = vmatprep.mubr.bf16.mxu0 0
      %463 = vmatmul.mubr.bf16.gmra.mrb[0].mxu0 %v363
      %v464 = vpop.f32.mrb[0].mxu0
      %v465 = vadd.f32 0.0, %v464
      %v466 = vpop.f32.mrb[0].mxu0
      %v467 = vpop.f32.mrb[0].mxu0
      %v468 = vadd.f32 0.0, %v467
      %v469 = vpop.f32.mrb[0].mxu0
      %470 = vmatprep.mubr.bf16.mxu0 0
      %471 = vmatmul.mubr.bf16.gmra.mrb[0].mxu0 %v366
      %v472 = vpop.f32.mrb[0].mxu0
      %v473 = vadd.f32 0.0, %v472
      %v474 = vpop.f32.mrb[0].mxu0
      %v475 = vpop.f32.mrb[0].mxu0
      %v476 = vadd.f32 0.0, %v475
      %v477 = vpop.f32.mrb[0].mxu0
      %478 = vmatprep.mubr.bf16.mxu0 0
      %479 = vmatmul.mubr.bf16.gmra.mrb[0].mxu0 %v369
      %v480 = vpop.f32.mrb[0].mxu0
      %v481 = vadd.f32 0.0, %v480
      %v482 = vpop.f32.mrb[0].mxu0
      %v483 = vpop.f32.mrb[0].mxu0
      %v484 = vadd.f32 0.0, %v483
      %v485 = vpop.f32.mrb[0].mxu0
      %486 = vmatprep.mubr.bf16.mxu0 0
      %487 = vmatmul.mubr.bf16.gmra.mrb[0].mxu0 %v372
      %v488 = vpop.f32.mrb[0].mxu0
      %v489 = vadd.f32 0.0, %v488
      %v490 = vpop.f32.mrb[0].mxu0
      %v491 = vpop.f32.mrb[0].mxu0
      %v492 = vadd.f32 0.0, %v491
      %v493 = vpop.f32.mrb[0].mxu0
      %494 = vmatprep.mubr.bf16.mxu0 0
      %495 = vmatmul.mubr.bf16.gmra.mrb[0].mxu0 %v375
      %v496 = vpop.f32.mrb[0].mxu0
      %v497 = vadd.f32 0.0, %v496
      %v498 = vpop.f32.mrb[0].mxu0
      %v499 = vpop.f32.mrb[0].mxu0
      %v500 = vadd.f32 0.0, %v499
      %v501 = vpop.f32.mrb[0].mxu0
      %502 = vmatprep.mubr.bf16.mxu0 0
      %503 = vmatmul.mubr.bf16.gmra.mrb[0].mxu0 %v378
      %v504 = vpop.f32.mrb[0].mxu0
      %v505 = vadd.f32 0.0, %v504
      %v506 = vpop.f32.mrb[0].mxu0
      %v507 = vpop.f32.mrb[0].mxu0
      %v508 = vadd.f32 0.0, %v507
      %v509 = vpop.f32.mrb[0].mxu0
      %510 = vmatprep.mubr.bf16.mxu0 0
      %511 = vmatmul.mubr.bf16.gmra.mrb[0].mxu0 %v381
      %v512 = vpop.f32.mrb[0].mxu0
      %v513 = vadd.f32 0.0, %v512
      %v514 = vpop.f32.mrb[0].mxu0
      %v515 = vpop.f32.mrb[0].mxu0
      %v516 = vadd.f32 0.0, %v515
      %v517 = vpop.f32.mrb[0].mxu0
      %518 = vmatprep.mubr.bf16.mxu0 0
      %519 = vmatmul.mubr.bf16.gmra.mrb[0].mxu0 %v384
      %v520 = vpop.f32.mrb[0].mxu0
      %v521 = vadd.f32 0.0, %v520
      %v522 = vpop.f32.mrb[0].mxu0
      %v523 = vpop.f32.mrb[0].mxu0
      %v524 = vadd.f32 0.0, %v523
      %v525 = vpop.f32.mrb[0].mxu0
      %526 = vmatprep.mubr.bf16.mxu0 0
      %527 = vmatmul.mubr.bf16.gmra.mrb[0].mxu0 %v387
      %v528 = vpop.f32.mrb[0].mxu0
      %v529 = vadd.f32 0.0, %v528
      %v530 = vpop.f32.mrb[0].mxu0
      %v531 = vpop.f32.mrb[0].mxu0
      %v532 = vadd.f32 0.0, %v531
      %v533 = vpop.f32.mrb[0].mxu0
      %534 = vmatprep.mubr.bf16.mxu0 0
      %535 = vmatmul.mubr.bf16.gmra.mrb[0].mxu0 %v390
      %v536 = vpop.f32.mrb[0].mxu0
      %v537 = vadd.f32 0.0, %v536
      %v538 = vpop.f32.mrb[0].mxu0
      %v539 = vpop.f32.mrb[0].mxu0
      %v540 = vadd.f32 0.0, %v539
      %v541 = vpop.f32.mrb[0].mxu0
      %542 = vmatprep.mubr.bf16.mxu0 0
      %543 = vmatmul.mubr.bf16.gmra.mrb[0].mxu0 %v393
      %v544 = vpop.f32.mrb[0].mxu0
      %v545 = vadd.f32 0.0, %v544
      %v546 = vpop.f32.mrb[0].mxu0
      %v547 = vpop.f32.mrb[0].mxu0
      %v548 = vadd.f32 0.0, %v547
      %v549 = vpop.f32.mrb[0].mxu0
      %550 = vmatprep.mubr.bf16.mxu0 0
      %551 = vmatmul.mubr.bf16.gmra.mrb[0].mxu0 %v396
      %v552 = vpop.f32.mrb[0].mxu0
      %v553 = vadd.f32 0.0, %v552
      %v554 = vpop.f32.mrb[0].mxu0
      %v555 = vpop.f32.mrb[0].mxu0
      %v556 = vadd.f32 0.0, %v555
      %v557 = vpop.f32.mrb[0].mxu0
      %558 = vdwg.mxu0
      %v559 = vpack.c.bf16 %v436, %v433
      %v560 = vpack.c.bf16 %v444, %v441
      %v561 = vpack.c.bf16 %v452, %v449
      %v562 = vpack.c.bf16 %v460, %v457
      %v563 = vpack.c.bf16 %v468, %v465
      %v564 = vpack.c.bf16 %v476, %v473
      %v565 = vpack.c.bf16 %v484, %v481
      %v566 = vpack.c.bf16 %v492, %v489
      %v567 = vpack.c.bf16 %v500, %v497
      %v568 = vpack.c.bf16 %v508, %v505
      %v569 = vpack.c.bf16 %v516, %v513
      %v570 = vpack.c.bf16 %v524, %v521
      %v571 = vpack.c.bf16 %v532, %v529
      %v572 = vpack.c.bf16 %v540, %v537
      %v573 = vpack.c.bf16 %v548, %v545
      %v574 = vpack.c.bf16 %v556, %v553
      %v591 = vunpack.c.l.b16 %v559
      %v592 = vunpack.c.h.b16 %v559
      %v593 = vunpack.c.l.b16 %v560
      %v594 = vunpack.c.h.b16 %v560
      %v595 = vunpack.c.l.b16 %v561
      %v596 = vunpack.c.h.b16 %v561
      %v597 = vunpack.c.l.b16 %v562
      %v598 = vunpack.c.h.b16 %v562
      %v599 = vunpack.c.l.b16 %v563
      %v600 = vunpack.c.h.b16 %v563
      %v601 = vunpack.c.l.b16 %v564
      %v602 = vunpack.c.h.b16 %v564
      %v603 = vunpack.c.l.b16 %v565
      %v604 = vunpack.c.h.b16 %v565
      %v605 = vunpack.c.l.b16 %v566
      %v606 = vunpack.c.h.b16 %v566
      %v607 = vunpack.c.l.b16 %v567
      %v608 = vunpack.c.h.b16 %v567
      %v609 = vunpack.c.l.b16 %v568
      %v610 = vunpack.c.h.b16 %v568
      %v611 = vunpack.c.l.b16 %v569
      %v612 = vunpack.c.h.b16 %v569
      %v613 = vunpack.c.l.b16 %v570
      %v614 = vunpack.c.h.b16 %v570
      %v615 = vunpack.c.l.b16 %v571
      %v616 = vunpack.c.h.b16 %v571
      %v617 = vunpack.c.l.b16 %v572
      %v618 = vunpack.c.h.b16 %v572
      %v619 = vunpack.c.l.b16 %v573
      %v620 = vunpack.c.h.b16 %v573
      %v621 = vunpack.c.l.b16 %v574
      %v622 = vunpack.c.h.b16 %v574
      %v623 = vpack.c.b16 %v591, %v591
      %v624 = vpack.c.b16 %v592, %v592
      %v625 = vpack.c.b16 %v593, %v593
      %v626 = vpack.c.b16 %v594, %v594
      %v627 = vpack.c.b16 %v595, %v595
      %v628 = vpack.c.b16 %v596, %v596
      %v629 = vpack.c.b16 %v597, %v597
      %v630 = vpack.c.b16 %v598, %v598
      %v631 = vpack.c.b16 %v599, %v599
      %v632 = vpack.c.b16 %v600, %v600
      %v633 = vpack.c.b16 %v601, %v601
      %v634 = vpack.c.b16 %v602, %v602
      %v635 = vpack.c.b16 %v603, %v603
      %v636 = vpack.c.b16 %v604, %v604
      %v637 = vpack.c.b16 %v605, %v605
      %v638 = vpack.c.b16 %v606, %v606
      %v639 = vpack.c.b16 %v607, %v607
      %v640 = vpack.c.b16 %v608, %v608
      %v641 = vpack.c.b16 %v609, %v609
      %v642 = vpack.c.b16 %v610, %v610
      %v643 = vpack.c.b16 %v611, %v611
      %v644 = vpack.c.b16 %v612, %v612
      %v645 = vpack.c.b16 %v613, %v613
      %v646 = vpack.c.b16 %v614, %v614
      %v647 = vpack.c.b16 %v615, %v615
      %v648 = vpack.c.b16 %v616, %v616
      %v649 = vpack.c.b16 %v617, %v617
      %v650 = vpack.c.b16 %v618, %v618
      %v651 = vpack.c.b16 %v619, %v619
      %v652 = vpack.c.b16 %v620, %v620
      %v653 = vpack.c.b16 %v621, %v621
      %v654 = vpack.c.b16 %v622, %v622
      %vm687 = vcmask 519168
      %688 = vst.msk [vmem:[%s214] sm:$0xf] %vm687, %v623
      %689 = vst.msk [vmem:[%s214 + $0x4] sm:$0xf] %vm687, %v624
      %690 = vst.msk [vmem:[%s214 + $0x8] sm:$0xf] %vm687, %v625
      %691 = vst.msk [vmem:[%s214 + $0xc] sm:$0xf] %vm687, %v626
      %692 = vst.msk [vmem:[%s214 + $0x10] sm:$0xf] %vm687, %v627
      %693 = vst.msk [vmem:[%s214 + $0x14] sm:$0xf] %vm687, %v628
      %694 = vst.msk [vmem:[%s214 + $0x18] sm:$0xf] %vm687, %v629
      %695 = vst.msk [vmem:[%s214 + $0x1c] sm:$0xf] %vm687, %v630
      %696 = vst.msk [vmem:[%s214 + $0x20] sm:$0xf] %vm687, %v631
      %697 = vst.msk [vmem:[%s214 + $0x24] sm:$0xf] %vm687, %v632
      %698 = vst.msk [vmem:[%s214 + $0x28] sm:$0xf] %vm687, %v633
      %699 = vst.msk [vmem:[%s214 + $0x2c] sm:$0xf] %vm687, %v634
      %700 = vst.msk [vmem:[%s214 + $0x30] sm:$0xf] %vm687, %v635
      %701 = vst.msk [vmem:[%s214 + $0x34] sm:$0xf] %vm687, %v636
      %702 = vst.msk [vmem:[%s214 + $0x38] sm:$0xf] %vm687, %v637
      %703 = vst.msk [vmem:[%s214 + $0x3c] sm:$0xf] %vm687, %v638
      %704 = vst.msk [vmem:[%s214 + $0x40] sm:$0xf] %vm687, %v639
      %705 = vst.msk [vmem:[%s214 + $0x44] sm:$0xf] %vm687, %v640
      %706 = vst.msk [vmem:[%s214 + $0x48] sm:$0xf] %vm687, %v641
      %707 = vst.msk [vmem:[%s214 + $0x4c] sm:$0xf] %vm687, %v642
      %708 = vst.msk [vmem:[%s214 + $0x50] sm:$0xf] %vm687, %v643
      %709 = vst.msk [vmem:[%s214 + $0x54] sm:$0xf] %vm687, %v644
      %710 = vst.msk [vmem:[%s214 + $0x58] sm:$0xf] %vm687, %v645
      %711 = vst.msk [vmem:[%s214 + $0x5c] sm:$0xf] %vm687, %v646
      %712 = vst.msk [vmem:[%s214 + $0x60] sm:$0xf] %vm687, %v647
      %713 = vst.msk [vmem:[%s214 + $0x64] sm:$0xf] %vm687, %v648
      %714 = vst.msk [vmem:[%s214 + $0x68] sm:$0xf] %vm687, %v649
      %715 = vst.msk [vmem:[%s214 + $0x6c] sm:$0xf] %vm687, %v650
      %716 = vst.msk [vmem:[%s214 + $0x70] sm:$0xf] %vm687, %v651
      %717 = vst.msk [vmem:[%s214 + $0x74] sm:$0xf] %vm687, %v652
      %718 = vst.msk [vmem:[%s214 + $0x78] sm:$0xf] %vm687, %v653
      %719 = vst.msk [vmem:[%s214 + $0x7c] sm:$0xf] %vm687, %v654
      %752 = vrot.lane.b32.xlu0 %v433, 64
      %v753 = vpop.permute.xlu0 %752
      %754 = vrot.lane.b32.xlu0 %v436, 64
      %v755 = vpop.permute.xlu0 %754
      %756 = vrot.lane.b32.xlu0 %v441, 64
      %v757 = vpop.permute.xlu0 %756
      %758 = vrot.lane.b32.xlu0 %v444, 64
      %v759 = vpop.permute.xlu0 %758
      %760 = vrot.lane.b32.xlu0 %v449, 64
      %v761 = vpop.permute.xlu0 %760
      %762 = vrot.lane.b32.xlu0 %v452, 64
      %v763 = vpop.permute.xlu0 %762
      %764 = vrot.lane.b32.xlu0 %v457, 64
      %v765 = vpop.permute.xlu0 %764
      %766 = vrot.lane.b32.xlu0 %v460, 64
      %v767 = vpop.permute.xlu0 %766
      %768 = vrot.lane.b32.xlu0 %v465, 64
      %v769 = vpop.permute.xlu0 %768
      %770 = vrot.lane.b32.xlu0 %v468, 64
      %v771 = vpop.permute.xlu0 %770
      %772 = vrot.lane.b32.xlu0 %v473, 64
      %v773 = vpop.permute.xlu0 %772
      %774 = vrot.lane.b32.xlu0 %v476, 64
      %v775 = vpop.permute.xlu0 %774
      %776 = vrot.lane.b32.xlu0 %v481, 64
      %v777 = vpop.permute.xlu0 %776
      %778 = vrot.lane.b32.xlu0 %v484, 64
      %v779 = vpop.permute.xlu0 %778
      %780 = vrot.lane.b32.xlu0 %v489, 64
      %v781 = vpop.permute.xlu0 %780
      %782 = vrot.lane.b32.xlu0 %v492, 64
      %v783 = vpop.permute.xlu0 %782
      %784 = vrot.lane.b32.xlu0 %v497, 64
      %v785 = vpop.permute.xlu0 %784
      %786 = vrot.lane.b32.xlu0 %v500, 64
      %v787 = vpop.permute.xlu0 %786
      %788 = vrot.lane.b32.xlu0 %v505, 64
      %v789 = vpop.permute.xlu0 %788
      %790 = vrot.lane.b32.xlu0 %v508, 64
      %v791 = vpop.permute.xlu0 %790
      %792 = vrot.lane.b32.xlu0 %v513, 64
      %v793 = vpop.permute.xlu0 %792
      %794 = vrot.lane.b32.xlu0 %v516, 64
      %v795 = vpop.permute.xlu0 %794
      %796 = vrot.lane.b32.xlu0 %v521, 64
      %v797 = vpop.permute.xlu0 %796
      %798 = vrot.lane.b32.xlu0 %v524, 64
      %v799 = vpop.permute.xlu0 %798
      %800 = vrot.lane.b32.xlu0 %v529, 64
      %v801 = vpop.permute.xlu0 %800
      %802 = vrot.lane.b32.xlu0 %v532, 64
      %v803 = vpop.permute.xlu0 %802
      %804 = vrot.lane.b32.xlu0 %v537, 64
      %v805 = vpop.permute.xlu0 %804
      %806 = vrot.lane.b32.xlu0 %v540, 64
      %v807 = vpop.permute.xlu0 %806
      %808 = vrot.lane.b32.xlu0 %v545, 64
      %v809 = vpop.permute.xlu0 %808
      %810 = vrot.lane.b32.xlu0 %v548, 64
      %v811 = vpop.permute.xlu0 %810
      %812 = vrot.lane.b32.xlu0 %v553, 64
      %v813 = vpop.permute.xlu0 %812
      %814 = vrot.lane.b32.xlu0 %v556, 64
      %v815 = vpop.permute.xlu0 %814
      %vm848 = vcmask 31744
      %849 = vst.msk [vmem:[%s220] sm:$0xff] %vm848, %v753
      %850 = vst.msk [vmem:[%s220 + $0x8] sm:$0xff] %vm848, %v755
      %851 = vst.msk [vmem:[%s220 + $0x10] sm:$0xff] %vm848, %v757
      %852 = vst.msk [vmem:[%s220 + $0x18] sm:$0xff] %vm848, %v759
      %853 = vst.msk [vmem:[%s220 + $0x20] sm:$0xff] %vm848, %v761
      %854 = vst.msk [vmem:[%s220 + $0x28] sm:$0xff] %vm848, %v763
      %855 = vst.msk [vmem:[%s220 + $0x30] sm:$0xff] %vm848, %v765
      %856 = vst.msk [vmem:[%s220 + $0x38] sm:$0xff] %vm848, %v767
      %857 = vst.msk [vmem:[%s220 + $0x40] sm:$0xff] %vm848, %v769
      %858 = vst.msk [vmem:[%s220 + $0x48] sm:$0xff] %vm848, %v771
      %859 = vst.msk [vmem:[%s220 + $0x50] sm:$0xff] %vm848, %v773
      %860 = vst.msk [vmem:[%s220 + $0x58] sm:$0xff] %vm848, %v775
      %861 = vst.msk [vmem:[%s220 + $0x60] sm:$0xff] %vm848, %v777
      %862 = vst.msk [vmem:[%s220 + $0x68] sm:$0xff] %vm848, %v779
      %863 = vst.msk [vmem:[%s220 + $0x70] sm:$0xff] %vm848, %v781
      %864 = vst.msk [vmem:[%s220 + $0x78] sm:$0xff] %vm848, %v783
      %865 = vst.msk [vmem:[%s220 + $0x80] sm:$0xff] %vm848, %v785
      %866 = vst.msk [vmem:[%s220 + $0x88] sm:$0xff] %vm848, %v787
      %867 = vst.msk [vmem:[%s220 + $0x90] sm:$0xff] %vm848, %v789
      %868 = vst.msk [vmem:[%s220 + $0x98] sm:$0xff] %vm848, %v791
      %869 = vst.msk [vmem:[%s220 + $0xa0] sm:$0xff] %vm848, %v793
      %870 = vst.msk [vmem:[%s220 + $0xa8] sm:$0xff] %vm848, %v795
      %871 = vst.msk [vmem:[%s220 + $0xb0] sm:$0xff] %vm848, %v797
      %872 = vst.msk [vmem:[%s220 + $0xb8] sm:$0xff] %vm848, %v799
      %873 = vst.msk [vmem:[%s220 + $0xc0] sm:$0xff] %vm848, %v801
      %874 = vst.msk [vmem:[%s220 + $0xc8] sm:$0xff] %vm848, %v803
      %875 = vst.msk [vmem:[%s220 + $0xd0] sm:$0xff] %vm848, %v805
      %876 = vst.msk [vmem:[%s220 + $0xd8] sm:$0xff] %vm848, %v807
      %877 = vst.msk [vmem:[%s220 + $0xe0] sm:$0xff] %vm848, %v809
      %878 = vst.msk [vmem:[%s220 + $0xe8] sm:$0xff] %vm848, %v811
      %879 = vst.msk [vmem:[%s220 + $0xf0] sm:$0xff] %vm848, %v813
      %880 = vst.msk [vmem:[%s220 + $0xf8] sm:$0xff] %vm848, %v815
      %881 = vrot.lane.b32.xlu0 %v433, 60
      %v882 = vpop.permute.xlu0 %881
      %883 = vrot.lane.b32.xlu0 %v436, 60
      %v884 = vpop.permute.xlu0 %883
      %885 = vrot.lane.b32.xlu0 %v441, 60
      %v886 = vpop.permute.xlu0 %885
      %887 = vrot.lane.b32.xlu0 %v444, 60
      %v888 = vpop.permute.xlu0 %887
      %889 = vrot.lane.b32.xlu0 %v449, 60
      %v890 = vpop.permute.xlu0 %889
      %891 = vrot.lane.b32.xlu0 %v452, 60
      %v892 = vpop.permute.xlu0 %891
      %893 = vrot.lane.b32.xlu0 %v457, 60
      %v894 = vpop.permute.xlu0 %893
      %895 = vrot.lane.b32.xlu0 %v460, 60
      %v896 = vpop.permute.xlu0 %895
      %897 = vrot.lane.b32.xlu0 %v465, 60
      %v898 = vpop.permute.xlu0 %897
      %899 = vrot.lane.b32.xlu0 %v468, 60
      %v900 = vpop.permute.xlu0 %899
      %901 = vrot.lane.b32.xlu0 %v473, 60
      %v902 = vpop.permute.xlu0 %901
      %903 = vrot.lane.b32.xlu0 %v476, 60
      %v904 = vpop.permute.xlu0 %903
      %905 = vrot.lane.b32.xlu0 %v481, 60
      %v906 = vpop.permute.xlu0 %905
      %907 = vrot.lane.b32.xlu0 %v484, 60
      %v908 = vpop.permute.xlu0 %907
      %909 = vrot.lane.b32.xlu0 %v489, 60
      %v910 = vpop.permute.xlu0 %909
      %911 = vrot.lane.b32.xlu0 %v492, 60
      %v912 = vpop.permute.xlu0 %911
      %913 = vrot.lane.b32.xlu0 %v497, 60
      %v914 = vpop.permute.xlu0 %913
      %915 = vrot.lane.b32.xlu0 %v500, 60
      %v916 = vpop.permute.xlu0 %915
      %917 = vrot.lane.b32.xlu0 %v505, 60
      %v918 = vpop.permute.xlu0 %917
      %919 = vrot.lane.b32.xlu0 %v508, 60
      %v920 = vpop.permute.xlu0 %919
      %921 = vrot.lane.b32.xlu0 %v513, 60
      %v922 = vpop.permute.xlu0 %921
      %923 = vrot.lane.b32.xlu0 %v516, 60
      %v924 = vpop.permute.xlu0 %923
      %925 = vrot.lane.b32.xlu0 %v521, 60
      %v926 = vpop.permute.xlu0 %925
      %927 = vrot.lane.b32.xlu0 %v524, 60
      %v928 = vpop.permute.xlu0 %927
      %929 = vrot.lane.b32.xlu0 %v529, 60
      %v930 = vpop.permute.xlu0 %929
      %931 = vrot.lane.b32.xlu0 %v532, 60
      %v932 = vpop.permute.xlu0 %931
      %933 = vrot.lane.b32.xlu0 %v537, 60
      %v934 = vpop.permute.xlu0 %933
      %935 = vrot.lane.b32.xlu0 %v540, 60
      %v936 = vpop.permute.xlu0 %935
      %937 = vrot.lane.b32.xlu0 %v545, 60
      %v938 = vpop.permute.xlu0 %937
      %939 = vrot.lane.b32.xlu0 %v548, 60
      %v940 = vpop.permute.xlu0 %939
      %941 = vrot.lane.b32.xlu0 %v553, 60
      %v942 = vpop.permute.xlu0 %941
      %943 = vrot.lane.b32.xlu0 %v556, 60
      %v944 = vpop.permute.xlu0 %943
      %977 = vst.msk [vmem:[%s226] sm:$0xff] %vm848, %v882
      %978 = vst.msk [vmem:[%s226 + $0x8] sm:$0xff] %vm848, %v884
      %979 = vst.msk [vmem:[%s226 + $0x10] sm:$0xff] %vm848, %v886
      %980 = vst.msk [vmem:[%s226 + $0x18] sm:$0xff] %vm848, %v888
      %981 = vst.msk [vmem:[%s226 + $0x20] sm:$0xff] %vm848, %v890
      %982 = vst.msk [vmem:[%s226 + $0x28] sm:$0xff] %vm848, %v892
      %983 = vst.msk [vmem:[%s226 + $0x30] sm:$0xff] %vm848, %v894
      %984 = vst.msk [vmem:[%s226 + $0x38] sm:$0xff] %vm848, %v896
      %985 = vst.msk [vmem:[%s226 + $0x40] sm:$0xff] %vm848, %v898
      %986 = vst.msk [vmem:[%s226 + $0x48] sm:$0xff] %vm848, %v900
      %987 = vst.msk [vmem:[%s226 + $0x50] sm:$0xff] %vm848, %v902
      %988 = vst.msk [vmem:[%s226 + $0x58] sm:$0xff] %vm848, %v904
      %989 = vst.msk [vmem:[%s226 + $0x60] sm:$0xff] %vm848, %v906
      %990 = vst.msk [vmem:[%s226 + $0x68] sm:$0xff] %vm848, %v908
      %991 = vst.msk [vmem:[%s226 + $0x70] sm:$0xff] %vm848, %v910
      %992 = vst.msk [vmem:[%s226 + $0x78] sm:$0xff] %vm848, %v912
      %993 = vst.msk [vmem:[%s226 + $0x80] sm:$0xff] %vm848, %v914
      %994 = vst.msk [vmem:[%s226 + $0x88] sm:$0xff] %vm848, %v916
      %995 = vst.msk [vmem:[%s226 + $0x90] sm:$0xff] %vm848, %v918
      %996 = vst.msk [vmem:[%s226 + $0x98] sm:$0xff] %vm848, %v920
      %997 = vst.msk [vmem:[%s226 + $0xa0] sm:$0xff] %vm848, %v922
      %998 = vst.msk [vmem:[%s226 + $0xa8] sm:$0xff] %vm848, %v924
      %999 = vst.msk [vmem:[%s226 + $0xb0] sm:$0xff] %vm848, %v926
      %1000 = vst.msk [vmem:[%s226 + $0xb8] sm:$0xff] %vm848, %v928
      %1001 = vst.msk [vmem:[%s226 + $0xc0] sm:$0xff] %vm848, %v930
      %1002 = vst.msk [vmem:[%s226 + $0xc8] sm:$0xff] %vm848, %v932
      %1003 = vst.msk [vmem:[%s226 + $0xd0] sm:$0xff] %vm848, %v934
      %1004 = vst.msk [vmem:[%s226 + $0xd8] sm:$0xff] %vm848, %v936
      %1005 = vst.msk [vmem:[%s226 + $0xe0] sm:$0xff] %vm848, %v938
      %1006 = vst.msk [vmem:[%s226 + $0xe8] sm:$0xff] %vm848, %v940
      %1007 = vst.msk [vmem:[%s226 + $0xf0] sm:$0xff] %vm848, %v942
      %1008 = vst.msk [vmem:[%s226 + $0xf8] sm:$0xff] %vm848, %v944
      %s1009 = smul.u32 32, %s16
      %p1010 = scmp.lt.s32.totalorder %s1009, 95
      %s1011 = scalar_select %p1010, %s1009, 95
      %s1012 = smul.addr %s1011, 4
      %s1013 = scalar_lea.vmem %s2, %s1012
      %s1014 = smul.u32 32, %s16
      %p1015 = scmp.lt.s32.totalorder %s1014, 95
      %s1016 = scalar_select %p1015, %s1014, 95
      %s1017 = smul.addr %s1016, 8
      %s1018 = scalar_lea.vmem %s3, %s1017
      %s1019 = smul.u32 32, %s16
      %p1020 = scmp.lt.s32.totalorder %s1019, 95
      %s1021 = scalar_select %p1020, %s1019, 95
      %s1022 = smul.addr %s1021, 8
      %s1023 = scalar_lea.vmem %s4, %s1022
      // Predicated region
      $region29: #{tpu_custom_call.1} parent=27 // pred_check
        %p1024 = pneg %p81
      $region30: #{tpu_custom_call.1} parent=27 // pred_check_branch
        %1026 = sbr.rel (%p1024) target = $region32
      $region31: #{tpu_custom_call.1} parent=27 // pred_region
        %s1027 = smul.u32 32, %s16
      $region32: #{tpu_custom_call.1} parent=27 // pred_fallthru
        _
      // Predicated region
      $region33: #{tpu_custom_call.1} parent=27 // pred_check
        %p1028 = pneg %p107
      $region34: #{tpu_custom_call.1} parent=27 // pred_check_branch
        %1030 = sbr.rel (%p1028) target = $region36
      $region35: #{tpu_custom_call.1} parent=27 // pred_region
        %s1031 = smul.u32 32, %s16
      $region36: #{tpu_custom_call.1} parent=27 // pred_fallthru
        _
      // Predicated region
      $region37: #{tpu_custom_call.1} parent=27 // pred_check
        %p1032 = pneg %p133
      $region38: #{tpu_custom_call.1} parent=27 // pred_check_branch
        %1034 = sbr.rel (%p1032) target = $region40
      $region39: #{tpu_custom_call.1} parent=27 // pred_region
        %s1035 = smul.u32 32, %s16
      $region40: #{tpu_custom_call.1} parent=27 // pred_fallthru
        _
    $region28: #{tpu_custom_call.1} parent=5 // pred_fallthru
      _
    %p1036 = scmp.le.s32.totalorder 2, %s11
    // Predicated region
    $region41: #{tpu_custom_call.1} parent=5 // pred_check
      %p1037 = pneg %p1036
    $region42: #{tpu_custom_call.1} parent=5 // pred_check_branch
      %1039 = sbr.rel (%p1037) target = $region44
    $region43: #{tpu_custom_call.1} parent=5 // pred_region
      %s1040 = ssub.s32 %s11, 2
      // Predicated region
      $region45: #{tpu_custom_call.1} parent=43 // pred_check
        %p1041 = pneg %p87
      $region46: #{tpu_custom_call.1} parent=43 // pred_check_branch
        %1043 = sbr.rel (%p1041) target = $region48
      $region47: #{tpu_custom_call.1} parent=43 // pred_region
        %s1044 = smul.u32 32, %s17
        %p1045 = scmp.lt.s32.totalorder %s1044, 95
        %s1046 = scalar_select %p1045, %s1044, 95
        %s1047 = smul.addr %s1046, 4
        %s1048 = scalar_lea.vmem %s2, %s1047
      $region48: #{tpu_custom_call.1} parent=43 // pred_fallthru
        _
      // Predicated region
      $region49: #{tpu_custom_call.1} parent=43 // pred_check
        %p1049 = pneg %p113
      $region50: #{tpu_custom_call.1} parent=43 // pred_check_branch
        %1051 = sbr.rel (%p1049) target = $region52
      $region51: #{tpu_custom_call.1} parent=43 // pred_region
        %s1052 = smul.u32 32, %s17
        %p1053 = scmp.lt.s32.totalorder %s1052, 95
        %s1054 = scalar_select %p1053, %s1052, 95
        %s1055 = smul.addr %s1054, 8
        %s1056 = scalar_lea.vmem %s3, %s1055
      $region52: #{tpu_custom_call.1} parent=43 // pred_fallthru
        _
      // Predicated region
      $region53: #{tpu_custom_call.1} parent=43 // pred_check
        %p1057 = pneg %p139
      $region54: #{tpu_custom_call.1} parent=43 // pred_check_branch
        %1059 = sbr.rel (%p1057) target = $region56
      $region55: #{tpu_custom_call.1} parent=43 // pred_region
        %s1060 = smul.u32 32, %s17
        %p1061 = scmp.lt.s32.totalorder %s1060, 95
        %s1062 = scalar_select %p1061, %s1060, 95
        %s1063 = smul.addr %s1062, 8
        %s1064 = scalar_lea.vmem %s4, %s1063
      $region56: #{tpu_custom_call.1} parent=43 // pred_fallthru
        _
    $region44: #{tpu_custom_call.1} parent=5 // pred_fallthru
      _
  $region6: #{tpu_custom_call.1} parent=0 // loop_footer
    %s15 = sadd.s32 1, %s11
  $region7: #{tpu_custom_call.1} parent=0 // loop_footer_branch
    %10 = sbr.rel target = $region3
  $region8: #{tpu_custom_call.1} parent=0 // loop_exit
    _

</llo_original>
